<compile_context>
chip_gen: v5e
topology: v5e:2x2
jax: 0.10.0
libtpu: 0.0.40
codegen_flags: <defaults>
</compile_context>

<pallas_src>
import functools

import numpy as np
import jax
import jax.numpy as jnp
from jax import lax
from jax.experimental import pallas as pl
from jax.experimental.pallas import tpu as pltpu


def _sma_kernel(q_ref, mem_ref, w_ref, out_ref, seam_ref, *, t_true):
    """One (batch-tile, T-tile) step.

    q_ref    : (TB, 1, Dctx)  precomputed query (resident across T tiles)
    mem_ref  : (TB, TT, Dctx) memory tile (streamed / double-buffered)
    w_ref    : (TB, TT)       previous alignment tile
    out_ref  : (TB, TT)       new alignment tile (seam element added in wrapper)
    seam_ref : (TB, 128)      last 128 w1 columns of this tile (col 127 is the
                              value the NEXT tile's first column must receive)
    """
    t_idx = pl.program_id(1)
    tt = w_ref.shape[1]

    # e[b, t] = sum_c memory[b, t, c] * q[b, c] on the MXU (flash-style
    # 'bqd,bkd->bqk' with q-length 1): T stays on lanes, f32 accumulation.
    e3 = jnp.einsum("bqc,btc->bqt", q_ref[...], mem_ref[...],
                    preferred_element_type=jnp.float32)        # (TB, 1, TT)
    e = e3[:, 0, :]                                            # (TB, TT)

    # e[:, T-1] = 10000.0 at the TRUE last column (T may be padded).
    col = lax.broadcasted_iota(jnp.int32, e.shape, 1)
    gcol = t_idx * tt + col
    e = jnp.where(gcol == t_true - 1, jnp.float32(10000.0), e)

    # p0 = isru_sigmoid(e) = 0.5 * (1 + e / sqrt(1 + e^2))   (VPU + EUP rsqrt)
    p0 = 0.5 * (1.0 + e * lax.rsqrt(1.0 + e * e))

    w = w_ref[...].astype(jnp.float32)
    w0 = w * p0
    w1 = w * (1.0 - p0)

    # out = w0 ; out[:, 1:] += w1[:, :-1]  (in-tile shift; first column of a
    # tile gets 0 here, the cross-tile seam is patched by the wrapper).
    w1_shift = pltpu.roll(w1, shift=1, axis=1)                 # circular in-tile
    w1_shift = jnp.where(col == 0, 0.0, w1_shift)

    out_ref[...] = (w0 + w1_shift).astype(out_ref.dtype)
    seam_ref[...] = w1[:, tt - 128:].astype(seam_ref.dtype)    # lane-dense store


def _vmem_capacity_bytes():
    try:
        return int(pltpu.get_tpu_info().vmem_capacity_bytes)
    except Exception:
        return 64 * 1024 * 1024  # conservative default (v7x per-core VMEM)


def _pick_tiles(B, T, Dctx, mem_itemsize):
    """Generation-aware (TB, TT) tile selection."""
    cap = _vmem_capacity_bytes()
    vmem_limit = min(cap * 3 // 4, 100 * 1024 * 1024)   # 48 MiB v7x / 96 MiB v5e,v6e
    mem_db_budget = cap * 3 // 8                         # 24 MiB v7x / 48 MiB v5e,v6e

    # Batch tile: sublane-aligned when possible, otherwise the full batch dim
    # (a block dim equal to the full array dim is always legal).
    TB = 8 if (B % 8 == 0) else B

    # Largest lane-dense T tile (multiple of 128) whose double-buffered memory
    # block fits the budget; capped at 4096 to bound vreg/VMEM pressure of the
    # (TB, TT) f32 elementwise intermediates.
    unit_bytes = 2 * TB * 128 * Dctx * mem_itemsize      # 2 buffers of one 128-col unit
    units_budget = max(1, min(32, mem_db_budget // max(unit_bytes, 1)))

    n128 = pl.cdiv(T, 128)
    if n128 <= units_budget:
        tt_units = n128                                  # single T tile
    elif T % 128 == 0:
        # Prefer an exact divisor (no memory padding) unless badly fragmented.
        div = max(d for d in range(1, units_budget + 1) if n128 % d == 0)
        k = pl.cdiv(n128, units_budget)
        tt_pad = pl.cdiv(n128, k)
        tt_units = div if div * 4 >= tt_pad else tt_pad
    else:
        k = pl.cdiv(n128, units_budget)
        tt_units = pl.cdiv(n128, k)                      # minimal-waste padding

    TT = 128 * tt_units
    n_t = pl.cdiv(T, TT)
    T_pad = n_t * TT
    return TB, TT, T_pad, n_t, vmem_limit


@jax.jit
def stepwise_monotonic_attention(x, w, memory, wq_t):
    """Eval-mode forward of StepwiseMonotonicAttention.

    x:(B, Din)  w:(B, T)  memory:(B, T, Dctx)  wq_t:(Din, Dctx)  -> (B, T)
    """
    B, _ = x.shape
    _, T, Dctx = memory.shape
    out_dtype = w.dtype

    # Hoisted tiny matmul; cast q to the memory dtype so the MXU sees matching
    # operand types (accumulation stays f32 via preferred_element_type).
    q = jnp.dot(x, wq_t).astype(memory.dtype).reshape(B, 1, Dctx)

    TB, TT, T_pad, n_t, vmem_limit = _pick_tiles(B, T, Dctx, memory.dtype.itemsize)

    if T_pad != T:
        # Zero-pad so every T tile is lane-dense; padded w columns are zero so
        # they contribute nothing, and the sentinel targets the true column.
        memory = jnp.pad(memory, ((0, 0), (0, T_pad - T), (0, 0)))
        w = jnp.pad(w, ((0, 0), (0, T_pad - T)))

    grid = (B // TB, n_t)

    grid_spec = pltpu.PrefetchScalarGridSpec(
        num_scalar_prefetch=0,
        grid=grid,
        in_specs=[
            pl.BlockSpec((TB, 1, Dctx), lambda b, t: (b, 0, 0)),    # q (resident)
            pl.BlockSpec((TB, TT, Dctx), lambda b, t: (b, t, 0)),   # memory (streamed)
            pl.BlockSpec((TB, TT), lambda b, t: (b, t)),            # w
        ],
        out_specs=[
            pl.BlockSpec((TB, TT), lambda b, t: (b, t)),            # out
            pl.BlockSpec((TB, 128), lambda b, t: (b, t)),           # per-tile seam info
        ],
    )

    mem_bytes = memory.size * memory.dtype.itemsize
    cost = pl.CostEstimate(
        flops=2 * B * T_pad * Dctx,
        transcendentals=B * T_pad,
        bytes_accessed=mem_bytes + 2 * B * T_pad * 4 + B * Dctx * 4 + B * n_t * 128 * 4,
    )

    out, seam = pl.pallas_call(
        functools.partial(_sma_kernel, t_true=T),
        out_shape=(
            jax.ShapeDtypeStruct((B, T_pad), out_dtype),
            jax.ShapeDtypeStruct((B, n_t * 128), jnp.float32),
        ),
        grid_spec=grid_spec,
        compiler_params=pltpu.CompilerParams(
            # Both axes are independent now (seam fixed in the wrapper), so the
            # v7x megacore can shard over T even for single-batch-tile cases.
            dimension_semantics=("parallel", "parallel"),
            vmem_limit_bytes=vmem_limit,
        ),
        cost_estimate=cost,
    )(q, memory, w)

    if n_t > 1:
        # Patch the one seam element per T-tile boundary:
        #   out[:, k*TT] += w1[:, k*TT - 1]   for k = 1 .. n_t-1
        # All seam columns are < T by construction (last tile holds the tail).
        seam_cols = np.arange(1, n_t) * TT
        seam_vals = seam.reshape(B, n_t, 128)[:, :-1, -1]
        out = out.at[:, seam_cols].add(seam_vals.astype(out_dtype))

    return out[:, :T] if T_pad != T else out


def _reference(x, w, memory, wq_t):
    q = x @ wq_t                                   # (B, Dctx)
    e = jnp.einsum("btc,bc->bt", memory, q)        # (B, T)
    e = e.at[:, -1].set(10000.0)
    p0 = 0.5 * (1.0 + e * lax.rsqrt(1.0 + e * e))
    w0 = w * p0
    w1 = w * (1.0 - p0)
    out = w0.at[:, 1:].add(w1[:, :-1])
    return out


if __name__ == "__main__":
    B, T = 2, 8
    dim_input, dim_context = 32, 32

    key = jax.random.PRNGKey(0)
    k_x, k_mem, k_w, k_wq = jax.random.split(key, 4)

    x = jax.random.normal(k_x, (B, dim_input), dtype=jnp.float32)
    memory = jax.random.normal(k_mem, (B, T, dim_context), dtype=jnp.float32)
    # previous alignment weights: softmax-normalized so they look like attention
    w_prev = jax.nn.softmax(jax.random.normal(k_w, (B, T), dtype=jnp.float32), axis=-1)

    # Parameters (deterministic init). PyTorch Linear weight is (out, in);
    # store the transpose (in, out) for the kernel.
    wq = jax.random.normal(k_wq, (dim_context, dim_input), dtype=jnp.float32) * 0.1
    wq_t = wq.T
    bias = jnp.array([1.0], dtype=jnp.float32)  # defined by module, unused in forward

    out = stepwise_monotonic_attention(x, w_prev, memory, wq_t)
    out = jax.block_until_ready(out)

    ref = _reference(x, w_prev, memory, wq_t)
    assert out.shape == (B, T)
    assert jnp.allclose(out, ref, atol=1e-5, rtol=1e-5), (out, ref)

    print("KERNEL_OK")
</pallas_src>

<mosaic_0001>
module attributes {stable_mosaic.version = 11 : i64} {
  func.func @_sma_kernel(%arg0: i32, %arg1: i32, %arg2: memref<2x1x32xf32, #tpu.memory_space<vmem>>, %arg3: memref<2x128x32xf32, #tpu.memory_space<vmem>>, %arg4: memref<2x128xf32, #tpu.memory_space<vmem>>, %arg5: memref<2x128xf32, #tpu.memory_space<vmem>>, %arg6: memref<2x128xf32, #tpu.memory_space<vmem>>) attributes {dimension_semantics = [#tpu.dimension_semantics<parallel>, #tpu.dimension_semantics<parallel>], iteration_bounds = array<i64: 1, 1>, scalar_prefetch = 0 : i64, scratch_operands = 0 : i64, tpu.core_type = #tpu.core_type<tc>, window_params = [{transform_indices = @transform_0, window_bounds = array<i64: 2, 1, 32>}, {transform_indices = @transform_1, window_bounds = array<i64: 2, 128, 32>}, {transform_indices = @transform_2, window_bounds = array<i64: 2, 128>}, {transform_indices = @transform_3, window_bounds = array<i64: 2, 128>}, {transform_indices = @transform_4, window_bounds = array<i64: 2, 128>}]} {
    %c0 = arith.constant 0 : index
    %c0_0 = arith.constant 0 : index
    %c0_1 = arith.constant 0 : index
    %0 = vector.load %arg2[%c0, %c0_0, %c0_1] : memref<2x1x32xf32, #tpu.memory_space<vmem>>, vector<2x1x32xf32>
    %c0_2 = arith.constant 0 : index
    %c0_3 = arith.constant 0 : index
    %c0_4 = arith.constant 0 : index
    %1 = vector.load %arg3[%c0_2, %c0_3, %c0_4] : memref<2x128x32xf32, #tpu.memory_space<vmem>>, vector<2x128x32xf32>
    "tpu.trace_start"() <{level = 10 : i32, message = "bqc,btc->bqt"}> : () -> ()
    %cst = arith.constant dense<0.000000e+00> : vector<2x1x128xf32>
    %2 = tpu.matmul %0, %1, %cst {dimension_numbers = #tpu.dot_dimension_numbers<[2], [2], [1], [1], [0, 0, 0, 1, 1, 1], [0], [0]>} : vector<2x1x32xf32>, vector<2x128x32xf32>, vector<2x1x128xf32> -> vector<2x1x128xf32>
    "tpu.trace_stop"() : () -> ()
    %3 = vector.shape_cast %2 : vector<2x1x128xf32> to vector<2x128xf32>
    %4 = tpu.iota {dimensions = array<i32: 1>} : vector<2x128xi32>
    %c128_i32 = arith.constant 128 : i32
    %5 = arith.muli %arg1, %c128_i32 : i32
    %6 = vector.broadcast %5 : i32 to vector<2x128xi32>
    %7 = arith.addi %6, %4 : vector<2x128xi32>
    %c7_i32 = arith.constant 7 : i32
    %8 = vector.broadcast %c7_i32 : i32 to vector<2x128xi32>
    %9 = arith.cmpi eq, %7, %8 : vector<2x128xi32>
    %cst_5 = arith.constant 1.000000e+04 : f32
    %10 = vector.broadcast %cst_5 : f32 to vector<2x128xf32>
    %11 = arith.select %9, %10, %3 : vector<2x128xi1>, vector<2x128xf32>
    %12 = arith.mulf %11, %11 : vector<2x128xf32>
    %cst_6 = arith.constant 1.000000e+00 : f32
    %13 = vector.broadcast %cst_6 : f32 to vector<2x128xf32>
    %14 = arith.addf %13, %12 : vector<2x128xf32>
    %15 = math.rsqrt %14 : vector<2x128xf32>
    %16 = arith.mulf %11, %15 : vector<2x128xf32>
    %cst_7 = arith.constant 1.000000e+00 : f32
    %17 = vector.broadcast %cst_7 : f32 to vector<2x128xf32>
    %18 = arith.addf %17, %16 : vector<2x128xf32>
    %cst_8 = arith.constant 5.000000e-01 : f32
    %19 = vector.broadcast %cst_8 : f32 to vector<2x128xf32>
    %20 = arith.mulf %19, %18 : vector<2x128xf32>
    %c0_9 = arith.constant 0 : index
    %c0_10 = arith.constant 0 : index
    %21 = vector.load %arg4[%c0_9, %c0_10] : memref<2x128xf32, #tpu.memory_space<vmem>>, vector<2x128xf32>
    %22 = arith.mulf %21, %20 : vector<2x128xf32>
    %cst_11 = arith.constant 1.000000e+00 : f32
    %23 = vector.broadcast %cst_11 : f32 to vector<2x128xf32>
    %24 = arith.subf %23, %20 : vector<2x128xf32>
    %25 = arith.mulf %21, %24 : vector<2x128xf32>
    %c1_i32 = arith.constant 1 : i32
    %26 = tpu.dynamic_rotate %25 by %c1_i32 dim 1 : vector<2x128xf32>, i32 -> vector<2x128xf32>
    %c0_i32 = arith.constant 0 : i32
    %27 = vector.broadcast %c0_i32 : i32 to vector<2x128xi32>
    %28 = arith.cmpi eq, %4, %27 : vector<2x128xi32>
    %cst_12 = arith.constant 0.000000e+00 : f32
    %29 = vector.broadcast %cst_12 : f32 to vector<2x128xf32>
    %30 = arith.select %28, %29, %26 : vector<2x128xi1>, vector<2x128xf32>
    %31 = arith.addf %22, %30 : vector<2x128xf32>
    %c0_13 = arith.constant 0 : index
    %c0_14 = arith.constant 0 : index
    %32 = vector.load %arg5[%c0_13, %c0_14] : memref<2x128xf32, #tpu.memory_space<vmem>>, vector<2x128xf32>
    tpu.vector_store %arg5[%c0_13, %c0_14], %31 {strides = array<i32>} : memref<2x128xf32, #tpu.memory_space<vmem>>, vector<2x128xf32>,
    %c0_15 = arith.constant 0 : index
    %c0_16 = arith.constant 0 : index
    %33 = vector.load %arg6[%c0_15, %c0_16] : memref<2x128xf32, #tpu.memory_space<vmem>>, vector<2x128xf32>
    tpu.vector_store %arg6[%c0_15, %c0_16], %25 {strides = array<i32>} : memref<2x128xf32, #tpu.memory_space<vmem>>, vector<2x128xf32>,
    return
  }
  func.func @transform_0(%arg0: i32, %arg1: i32) -> (i32, i32, i32) {
    %c0_i32 = arith.constant 0 : i32
    %c0_i32_0 = arith.constant 0 : i32
    %c0_i32_1 = arith.constant 0 : i32
    return %arg0, %c0_i32, %c0_i32_0 : i32, i32, i32
  }
  func.func @transform_1(%arg0: i32, %arg1: i32) -> (i32, i32, i32) {
    %c0_i32 = arith.constant 0 : i32
    %c0_i32_0 = arith.constant 0 : i32
    return %arg0, %arg1, %c0_i32 : i32, i32, i32
  }
  func.func @transform_2(%arg0: i32, %arg1: i32) -> (i32, i32) {
    %c0_i32 = arith.constant 0 : i32
    return %arg0, %arg1 : i32, i32
  }
  func.func @transform_3(%arg0: i32, %arg1: i32) -> (i32, i32) {
    %c0_i32 = arith.constant 0 : i32
    return %arg0, %arg1 : i32, i32
  }
  func.func @transform_4(%arg0: i32, %arg1: i32) -> (i32, i32) {
    %c0_i32 = arith.constant 0 : i32
    return %arg0, %arg1 : i32, i32
  }
}

</mosaic_0001>

<llo_original>
// kernel: stepwise_monotonic_attention.1
$region0: #{stepwise_monotonic_attention.1}
  #allocation0 [shape = 'u32[]', space=smem, size = 0x4, offset = 0x4, fixed_abs, tag = 'smem constant byte address 0x4 - core index']
  #allocation1 [shape = 'u32[72,128]{1,0:T(1,128)}', space=vmem, size = 0x9000, scoped, tag = 'internal scratch']
  %s0 = inlined_call_operand.vmem [shape: f32[2,1,32], index: 0, kind: input, shape index: {}]
  %s1 = inlined_call_operand.vmem [shape: f32[2,128,32], index: 1, kind: input, shape index: {}]
  %s2 = inlined_call_operand.vmem [shape: f32[2,128], index: 2, kind: input, shape index: {}]
  %s3 = inlined_call_operand.hbm [shape: f32[2,128], index: 3, kind: output, shape index: {0}]
  %s4 = inlined_call_operand.hbm [shape: f32[2,128], index: 4, kind: output, shape index: {1}]
  %5 = xla_tuple %s3, %s4
  %s6 = sld [smem:[#allocation0]]
  $region30: #{stepwise_monotonic_attention.1} parent=0
    _
  %s8 = ssub.s32 1, %s6
  %s9 = scalar_select 0, %s8, %s6
  $region1: #{stepwise_monotonic_attention.1} parent=0
    #allocation2 [shape = 'u8[1024]{0}', space=vmem, size = 0x400, scoped, tag = 'output window, operand 0, single buffered']
    #allocation3 [shape = 's32[1]{0}', space=sflag, size = 0x4, scoped, tag = 'scoped memory for stepwise_monotonic_attention.1']
    #allocation4 [shape = 'u8[1024]{0}', space=vmem, size = 0x400, scoped, tag = 'output window, operand 1, single buffered']
    #allocation5 [shape = 's32[1]{0}', space=sflag, size = 0x4, scoped, tag = 'scoped memory for stepwise_monotonic_attention.1']
    %10 = vsyncpa [#allocation3], 0
    %11 = vsyncpa [#allocation5], 0
    // Predicated region
    $region2: #{stepwise_monotonic_attention.1} parent=1 // pred_check
      _
    $region3: #{stepwise_monotonic_attention.1} parent=1 // pred_check_branch
      %13 = sbr.rel (0) target = $region5
    $region4: #{stepwise_monotonic_attention.1} parent=1 // pred_region
      _
    $region5: #{stepwise_monotonic_attention.1} parent=1 // pred_fallthru
      _
    // Predicated region
    $region6: #{stepwise_monotonic_attention.1} parent=1 // pred_check
      _
    $region7: #{stepwise_monotonic_attention.1} parent=1 // pred_check_branch
      %15 = sbr.rel (0) target = $region9
    $region8: #{stepwise_monotonic_attention.1} parent=1 // pred_region
      _
    $region9: #{stepwise_monotonic_attention.1} parent=1 // pred_fallthru
      _
    // Predicated region
    $region10: #{stepwise_monotonic_attention.1} parent=1 // pred_check
      _
    $region11: #{stepwise_monotonic_attention.1} parent=1 // pred_check_branch
      %17 = sbr.rel (0) target = $region13
    $region12: #{stepwise_monotonic_attention.1} parent=1 // pred_region
      _
    $region13: #{stepwise_monotonic_attention.1} parent=1 // pred_fallthru
      _
    %v18 = vld [vmem:[%s0] sm:$0x1]
    %v19 = vld [vmem:[%s0 + $0x1] sm:$0x1]
    %v20 = vld [vmem:[%s1] sm:$0xff]
    %v21 = vld [vmem:[%s1 + $0x8] sm:$0xff]
    %v22 = vld [vmem:[%s1 + $0x10] sm:$0xff]
    %v23 = vld [vmem:[%s1 + $0x18] sm:$0xff]
    %v24 = vld [vmem:[%s1 + $0x20] sm:$0xff]
    %v25 = vld [vmem:[%s1 + $0x28] sm:$0xff]
    %v26 = vld [vmem:[%s1 + $0x30] sm:$0xff]
    %v27 = vld [vmem:[%s1 + $0x38] sm:$0xff]
    %v28 = vld [vmem:[%s1 + $0x40] sm:$0xff]
    %v29 = vld [vmem:[%s1 + $0x48] sm:$0xff]
    %v30 = vld [vmem:[%s1 + $0x50] sm:$0xff]
    %v31 = vld [vmem:[%s1 + $0x58] sm:$0xff]
    %v32 = vld [vmem:[%s1 + $0x60] sm:$0xff]
    %v33 = vld [vmem:[%s1 + $0x68] sm:$0xff]
    %v34 = vld [vmem:[%s1 + $0x70] sm:$0xff]
    %v35 = vld [vmem:[%s1 + $0x78] sm:$0xff]
    %v36 = vld [vmem:[%s1 + $0x80] sm:$0xff]
    %v37 = vld [vmem:[%s1 + $0x88] sm:$0xff]
    %v38 = vld [vmem:[%s1 + $0x90] sm:$0xff]
    %v39 = vld [vmem:[%s1 + $0x98] sm:$0xff]
    %v40 = vld [vmem:[%s1 + $0xa0] sm:$0xff]
    %v41 = vld [vmem:[%s1 + $0xa8] sm:$0xff]
    %v42 = vld [vmem:[%s1 + $0xb0] sm:$0xff]
    %v43 = vld [vmem:[%s1 + $0xb8] sm:$0xff]
    %v44 = vld [vmem:[%s1 + $0xc0] sm:$0xff]
    %v45 = vld [vmem:[%s1 + $0xc8] sm:$0xff]
    %v46 = vld [vmem:[%s1 + $0xd0] sm:$0xff]
    %v47 = vld [vmem:[%s1 + $0xd8] sm:$0xff]
    %v48 = vld [vmem:[%s1 + $0xe0] sm:$0xff]
    %v49 = vld [vmem:[%s1 + $0xe8] sm:$0xff]
    %v50 = vld [vmem:[%s1 + $0xf0] sm:$0xff]
    %v51 = vld [vmem:[%s1 + $0xf8] sm:$0xff]
    %vm52 = vcmask 261120
    %v54 = vsel %vm52, %v18, 0
    %v57 = vsel %vm52, %v20, 0
    %v60 = vsel %vm52, %v21, 0
    %v63 = vsel %vm52, %v22, 0
    %v66 = vsel %vm52, %v23, 0
    %v69 = vsel %vm52, %v24, 0
    %v72 = vsel %vm52, %v25, 0
    %v75 = vsel %vm52, %v26, 0
    %v78 = vsel %vm52, %v27, 0
    %v81 = vsel %vm52, %v28, 0
    %v84 = vsel %vm52, %v29, 0
    %v87 = vsel %vm52, %v30, 0
    %v90 = vsel %vm52, %v31, 0
    %v93 = vsel %vm52, %v32, 0
    %v96 = vsel %vm52, %v33, 0
    %v99 = vsel %vm52, %v34, 0
    %v102 = vsel %vm52, %v35, 0
    %104 = vmatpush.xpose.msra.mxu0 %v102
    %105 = vmatpush.xpose.msra.mxu0 %v99
    %106 = vmatpush.xpose.msra.mxu0 %v96
    %107 = vmatpush.xpose.msra.mxu0 %v93
    %108 = vmatpush.xpose.msra.mxu0 %v90
    %109 = vmatpush.xpose.msra.mxu0 %v87
    %110 = vmatpush.xpose.msra.mxu0 %v84
    %111 = vmatpush.xpose.msra.mxu0 %v81
    %112 = vmatpush.xpose.msra.mxu0 %v78
    %113 = vmatpush.xpose.msra.mxu0 %v75
    %114 = vmatpush.xpose.msra.mxu0 %v72
    %115 = vmatpush.xpose.msra.mxu0 %v69
    %116 = vmatpush.xpose.msra.mxu0 %v66
    %117 = vmatpush.xpose.msra.mxu0 %v63
    %118 = vmatpush.xpose.msra.mxu0 %v60
    %119 = vmatpush.xpose.msra.mxu0 %v57
    %120 = vmatmul.f32.gmra.mxu0 %v54
    %v121 = vpop.f32.mrf.mxu0
    %v122 = vadd.f32 0.0, %v121
    %123 = vdwg.mxu0
    %v125 = vsel %vm52, %v19, 0
    %v128 = vsel %vm52, %v36, 0
    %v131 = vsel %vm52, %v37, 0
    %v134 = vsel %vm52, %v38, 0
    %v137 = vsel %vm52, %v39, 0
    %v140 = vsel %vm52, %v40, 0
    %v143 = vsel %vm52, %v41, 0
    %v146 = vsel %vm52, %v42, 0
    %v149 = vsel %vm52, %v43, 0
    %v152 = vsel %vm52, %v44, 0
    %v155 = vsel %vm52, %v45, 0
    %v158 = vsel %vm52, %v46, 0
    %v161 = vsel %vm52, %v47, 0
    %v164 = vsel %vm52, %v48, 0
    %v167 = vsel %vm52, %v49, 0
    %v170 = vsel %vm52, %v50, 0
    %v173 = vsel %vm52, %v51, 0
    %175 = vmatpush.xpose.msra.mxu0 %v173
    %176 = vmatpush.xpose.msra.mxu0 %v170
    %177 = vmatpush.xpose.msra.mxu0 %v167
    %178 = vmatpush.xpose.msra.mxu0 %v164
    %179 = vmatpush.xpose.msra.mxu0 %v161
    %180 = vmatpush.xpose.msra.mxu0 %v158
    %181 = vmatpush.xpose.msra.mxu0 %v155
    %182 = vmatpush.xpose.msra.mxu0 %v152
    %183 = vmatpush.xpose.msra.mxu0 %v149
    %184 = vmatpush.xpose.msra.mxu0 %v146
    %185 = vmatpush.xpose.msra.mxu0 %v143
    %186 = vmatpush.xpose.msra.mxu0 %v140
    %187 = vmatpush.xpose.msra.mxu0 %v137
    %188 = vmatpush.xpose.msra.mxu0 %v134
    %189 = vmatpush.xpose.msra.mxu0 %v131
    %190 = vmatpush.xpose.msra.mxu0 %v128
    %191 = vmatmul.f32.gmra.mxu0 %v125
    %v192 = vpop.f32.mrf.mxu0
    %v193 = vadd.f32 0.0, %v192
    %194 = vdwg.mxu0
    %v195 = vlaneseq
    %v196 = vand.u32 %v195, 127
    %s197 = smul.u32 0, 128
    %v198 = vstv %s197
    %v199 = vadd.s32 %v198, %v196
    %vm200 = vcmp.eq.s32.totalorder %v199, 7
    %v203 = vrot.slane %v193, 7
    %vm204 = vcmask 1041409
    %v205 = vsel %vm204, %v203, %v122
    %v207 = vsel %vm200, 10000.0, %v205
    %v208 = vmul.f32 %v207, %v207
    %v209 = vadd.f32 %v208, 1.0
    %v210 = vrsqrt.pop %v209
    %v211 = vmul.f32 %v210, %v209
    %v212 = vmul.f32 %v211, %v210
    %v213 = vmul.f32 0.5, %v212
    %v214 = vsub.f32 1.5, %v213
    %v215 = vmul.f32 %v210, %v214
    %vm216 = vweird.f32 %v209
    %vm217 = vweird.f32 %v210
    %vm218 = vmor %vm216, %vm217
    %v219 = vsel %vm218, %v210, %v215
    %v220 = vmul.f32 %v207, %v219
    %v221 = vadd.f32 %v220, 1.0
    %v222 = vmul.f32 %v221, 0.5
    %v223 = vld [vmem:[%s2] sm:$0x3]
    %v224 = vmul.f32 %v223, %v222
    %v225 = vsub.f32 1.0, %v222
    %v226 = vmul.f32 %v223, %v225
    %227 = vrot.lane.b32.xlu0 %v226, 1
    %v228 = vpop.permute.xlu0 %227
    %vm229 = vcmp.eq.s32.totalorder %v196, 0
    %v230 = vsel %vm229, 0.0, %v228
    %v231 = vadd.f32 %v224, %v230
    %232 = vst [vmem:[#allocation2] sm:$0x3] %v231
    %233 = vst [vmem:[#allocation4] sm:$0x3] %v226
    // Predicated region
    $region14: #{stepwise_monotonic_attention.1} parent=1 // pred_check
      _
    $region15: #{stepwise_monotonic_attention.1} parent=1 // pred_check_branch
      %235 = sbr.rel (0) target = $region17
    $region16: #{stepwise_monotonic_attention.1} parent=1 // pred_region
      %237 = vsyncadd [#allocation3], 0
      %s239 = sshll.u32 [#allocation2], 4
      %s240 = int_to_ptr.vmem [resolvable:$true] %s239
      %s241 = sshll.u32 %s3, 4
      %s242 = int_to_ptr.hbm [resolvable:$true] %s241
      %244 = dma.vmem_to_hbm [thread:$0]  %s240, 32, %s242, [#allocation3]
    $region17: #{stepwise_monotonic_attention.1} parent=1 // pred_fallthru
      _
    // Predicated region
    $region18: #{stepwise_monotonic_attention.1} parent=1 // pred_check
      _
    $region19: #{stepwise_monotonic_attention.1} parent=1 // pred_check_branch
      %246 = sbr.rel (0) target = $region21
    $region20: #{stepwise_monotonic_attention.1} parent=1 // pred_region
      %248 = vsyncadd [#allocation5], 0
      %s250 = sshll.u32 [#allocation4], 4
      %s251 = int_to_ptr.vmem [resolvable:$true] %s250
      %s252 = sshll.u32 %s4, 4
      %s253 = int_to_ptr.hbm [resolvable:$true] %s252
      %255 = dma.vmem_to_hbm [thread:$0]  %s251, 32, %s253, [#allocation5]
    $region21: #{stepwise_monotonic_attention.1} parent=1 // pred_fallthru
      _
    // Predicated region
    $region22: #{stepwise_monotonic_attention.1} parent=1 // pred_check
      _
    $region23: #{stepwise_monotonic_attention.1} parent=1 // pred_check_branch
      %257 = sbr.rel (0) target = $region25
    $region24: #{stepwise_monotonic_attention.1} parent=1 // pred_region
      %259 = dma.done [#allocation3], 32
    $region25: #{stepwise_monotonic_attention.1} parent=1 // pred_fallthru
      _
    // Predicated region
    $region26: #{stepwise_monotonic_attention.1} parent=1 // pred_check
      _
    $region27: #{stepwise_monotonic_attention.1} parent=1 // pred_check_branch
      %261 = sbr.rel (0) target = $region29
    $region28: #{stepwise_monotonic_attention.1} parent=1 // pred_region
      %263 = dma.done [#allocation5], 32
    $region29: #{stepwise_monotonic_attention.1} parent=1 // pred_fallthru
      _
    %264 = vsyncpa [#allocation3], 1
    %265 = vsyncpa [#allocation5], 1

</llo_original>
